<compile_context>
chip_gen: v7x
topology: tpu7x:2x2x1
jax: 0.10.0
libtpu: 0.0.40
codegen_flags: <defaults>
</compile_context>

<pallas_src>
import math

import jax
import jax.numpy as jnp
from jax.experimental import pallas as pl
from jax.experimental.pallas import tpu as pltpu


def _csl_kernel(x_ref, gate_ref, fb_ref, wl_ref, o_ref):
    # x_ref:    (Bb, tn, d_in)
    # gate_ref: (Bb, 1, d_out)   fb_ref: (Bb, 1, d_out)   (already f32)
    # wl_ref:   (d_in, d_out)
    # o_ref:    (Bb, tn, d_out)
    bb, tn, d_in = x_ref.shape
    d_out = wl_ref.shape[1]

    gate = gate_ref[...].astype(jnp.float32)   # (Bb, 1, d_out)
    fbias = fb_ref[...].astype(jnp.float32)    # (Bb, 1, d_out)

    if bb == 1:
        h = jnp.dot(x_ref[0], wl_ref[...], preferred_element_type=jnp.float32)
        o_ref[0] = (h * gate[0] + fbias[0]).astype(o_ref.dtype)
    else:
        # Bb > 1 only when tn is a multiple of 8, so this reshape is a free
        # merge of the two leading (non-lane) dims.
        x2 = x_ref[...].reshape(bb * tn, d_in)
        h = jnp.dot(x2, wl_ref[...], preferred_element_type=jnp.float32)
        h = h.reshape(bb, tn, d_out)
        o_ref[...] = (h * gate + fbias).astype(o_ref.dtype)


def concat_squash_linear(ctx, x, w_layer, b_layer, w_gate, b_gate, w_bias,
                         *, tile_rows=4096, out_dtype=None):
    """Fused ConcatSquashLinear forward (covers forward() and batch_generate()).

    ctx: (B, d_ctx) or (B, 1, d_ctx);  x: (B, N, d_in).
    Weights stored transposed relative to torch.nn.Linear:
      w_layer: (d_in, d_out), b_layer: (d_out,)
      w_gate:  (d_ctx, d_out), b_gate: (d_out,)
      w_bias:  (d_ctx, d_out)              (no bias, like the module)
    Returns (B, N, d_out) in out_dtype (default: x.dtype).
    """
    B, N, d_in = x.shape
    d_out = w_layer.shape[1]
    d_ctx = w_gate.shape[0]
    out_dtype = x.dtype if out_dtype is None else jnp.dtype(out_dtype)

    # ---- Hoisted hyper-net (tiny per-batch math, plain JAX/XLA) -------------
    c2 = ctx.reshape(B, d_ctx).astype(jnp.float32)
    gate = jax.nn.sigmoid(c2 @ w_gate.astype(jnp.float32)
                          + b_gate.astype(jnp.float32))               # (B, d_out)
    fused_bias = gate * b_layer.astype(jnp.float32) \
        + c2 @ w_bias.astype(jnp.float32)                             # (B, d_out)

    # ---- Lane-dense output: pad d_out to a multiple of 128 ------------------
    d_out_p = ((d_out + 127) // 128) * 128
    pad = d_out_p - d_out
    if pad:
        w_layer_p = jnp.pad(w_layer, ((0, 0), (0, pad)))
        gate = jnp.pad(gate, ((0, 0), (0, pad)))
        fused_bias = jnp.pad(fused_bias, ((0, 0), (0, pad)))
    else:
        w_layer_p = w_layer
    gate3 = gate.reshape(B, 1, d_out_p)
    fbias3 = fused_bias.reshape(B, 1, d_out_p)

    # ---- Tiling: big row tiles, plus batch blocking when N is small ---------
    if N <= tile_rows:
        tn = N
    else:
        tn = max(8, (tile_rows // 8) * 8)
    bb = 1
    if tn == N and tn % 8 == 0 and B > 1:
        cap = max(1, tile_rows // tn)
        for cand in range(min(B, cap), 0, -1):      # largest divisor of B <= cap
            if B % cand == 0:
                bb = cand
                break
    grid = (pl.cdiv(B, bb), pl.cdiv(N, tn))

    # ---- dtype-aware VMEM budget (2x pipelined tiles + resident weight) -----
    xbytes = jnp.dtype(x.dtype).itemsize
    obytes = jnp.dtype(out_dtype).itemsize
    wbytes = jnp.dtype(w_layer_p.dtype).itemsize
    tile_in = bb * tn * d_in * xbytes
    tile_out = bb * tn * d_out_p * obytes
    tile_gb = 2 * bb * d_out_p * 4
    resident = d_in * d_out_p * wbytes
    vmem_need = 2 * (tile_in + tile_out + tile_gb) + 2 * resident + (2 << 20)
    vmem_limit = int(min(max(vmem_need, 4 << 20), 64 << 20))

    out_p = pl.pallas_call(
        _csl_kernel,
        out_shape=jax.ShapeDtypeStruct((B, N, d_out_p), out_dtype),
        grid=grid,
        in_specs=[
            pl.BlockSpec((bb, tn, d_in), lambda b, i: (b, i, 0)),     # x tile
            pl.BlockSpec((bb, 1, d_out_p), lambda b, i: (b, 0, 0)),   # gate
            pl.BlockSpec((bb, 1, d_out_p), lambda b, i: (b, 0, 0)),   # fused bias
            pl.BlockSpec((d_in, d_out_p), lambda b, i: (0, 0)),       # W_layer
        ],
        out_specs=pl.BlockSpec((bb, tn, d_out_p), lambda b, i: (b, i, 0)),
        compiler_params=pltpu.CompilerParams(
            dimension_semantics=("parallel", "parallel"),
            vmem_limit_bytes=vmem_limit),
    )(x, gate3, fbias3, w_layer_p)

    if pad:
        out_p = out_p[..., :d_out]
    return out_p


def _init_linear_params(key, fan_in, fan_out, bias=True):
    """Mimic torch.nn.Linear default init; weight stored as (fan_in, fan_out)."""
    kw, kb = jax.random.split(key)
    bound = 1.0 / math.sqrt(fan_in)
    w = jax.random.uniform(kw, (fan_in, fan_out), jnp.float32, -bound, bound)
    if bias:
        b = jax.random.uniform(kb, (fan_out,), jnp.float32, -bound, bound)
        return w, b
    return w, None


if __name__ == "__main__":
    key = jax.random.PRNGKey(0)
    k_x, k_c, k_l, k_g, k_b = jax.random.split(key, 5)

    # Shapes consistent with ConcatSquashLinear usage in the point-cloud model:
    # x: (batch=2, points=256, dim_in=4), ctx: (2, 1, dim_ctx=8), dim_out=128.
    B, N, d_in, d_ctx, d_out = 2, 256, 4, 8, 128

    x = jax.random.normal(k_x, (B, N, d_in), dtype=jnp.float32)
    ctx = jax.random.normal(k_c, (B, 1, d_ctx), dtype=jnp.float32)

    w_layer, b_layer = _init_linear_params(k_l, d_in, d_out)
    w_gate, b_gate = _init_linear_params(k_g, d_ctx, d_out)
    w_bias, _ = _init_linear_params(k_b, d_ctx, d_out, bias=False)

    out = concat_squash_linear(ctx, x, w_layer, b_layer, w_gate, b_gate, w_bias)
    out = jax.block_until_ready(out)

    # Pure-JAX reference of the same math.
    c2 = ctx.reshape(B, d_ctx)
    gate = jax.nn.sigmoid(c2 @ w_gate + b_gate)            # (B, d_out)
    bias = c2 @ w_bias                                     # (B, d_out)
    ref = (x @ w_layer + b_layer) * gate[:, None, :] + bias[:, None, :]

    assert out.shape == (B, N, d_out)
    assert jnp.allclose(out, ref, atol=1e-4, rtol=1e-4), \
        float(jnp.max(jnp.abs(out - ref)))

    print("KERNEL_OK")
</pallas_src>

<mosaic_0001>
module attributes {stable_mosaic.version = 11 : i64} {
  func.func @_csl_kernel(%arg0: i32, %arg1: i32, %arg2: memref<2x256x4xf32, #tpu.memory_space<vmem>>, %arg3: memref<2x1x128xf32, #tpu.memory_space<vmem>>, %arg4: memref<2x1x128xf32, #tpu.memory_space<vmem>>, %arg5: memref<4x128xf32, #tpu.memory_space<vmem>>, %arg6: memref<2x256x128xf32, #tpu.memory_space<vmem>>) attributes {dimension_semantics = [#tpu.dimension_semantics<parallel>, #tpu.dimension_semantics<parallel>], iteration_bounds = array<i64: 1, 1>, scalar_prefetch = 0 : i64, scratch_operands = 0 : i64, tpu.core_type = #tpu.core_type<tc>, window_params = [{transform_indices = @transform_0, window_bounds = array<i64: 2, 256, 4>}, {transform_indices = @transform_1, window_bounds = array<i64: 2, 1, 128>}, {transform_indices = @transform_2, window_bounds = array<i64: 2, 1, 128>}, {pipeline_mode = #tpu.pipeline_mode<synchronous>, transform_indices = @transform_3, window_bounds = array<i64: 4, 128>}, {transform_indices = @transform_4, window_bounds = array<i64: 2, 256, 128>}]} {
    %c0 = arith.constant 0 : index
    %c0_0 = arith.constant 0 : index
    %c0_1 = arith.constant 0 : index
    %0 = vector.load %arg3[%c0, %c0_0, %c0_1] : memref<2x1x128xf32, #tpu.memory_space<vmem>>, vector<2x1x128xf32>
    %c0_2 = arith.constant 0 : index
    %c0_3 = arith.constant 0 : index
    %c0_4 = arith.constant 0 : index
    %1 = vector.load %arg4[%c0_2, %c0_3, %c0_4] : memref<2x1x128xf32, #tpu.memory_space<vmem>>, vector<2x1x128xf32>
    %c0_5 = arith.constant 0 : index
    %c0_6 = arith.constant 0 : index
    %c0_7 = arith.constant 0 : index
    %2 = vector.load %arg2[%c0_5, %c0_6, %c0_7] : memref<2x256x4xf32, #tpu.memory_space<vmem>>, vector<2x256x4xf32>
    %3 = vector.shape_cast %2 : vector<2x256x4xf32> to vector<512x4xf32>
    %c0_8 = arith.constant 0 : index
    %c0_9 = arith.constant 0 : index
    %4 = vector.load %arg5[%c0_8, %c0_9] : memref<4x128xf32, #tpu.memory_space<vmem>>, vector<4x128xf32>
    %cst = arith.constant dense<0.000000e+00> : vector<512x128xf32>
    %5 = tpu.matmul %3, %4, %cst {dimension_numbers = #tpu.dot_dimension_numbers<[1], [0], [0], [1], [0, 0, 1, 1], [], []>} : vector<512x4xf32>, vector<4x128xf32>, vector<512x128xf32> -> vector<512x128xf32>
    %6 = vector.shape_cast %5 : vector<512x128xf32> to vector<2x256x128xf32>
    %7 = vector.broadcast %0 : vector<2x1x128xf32> to vector<2x256x128xf32>
    %8 = arith.mulf %6, %7 : vector<2x256x128xf32>
    %9 = vector.broadcast %1 : vector<2x1x128xf32> to vector<2x256x128xf32>
    %10 = arith.addf %8, %9 : vector<2x256x128xf32>
    %c0_10 = arith.constant 0 : index
    %c0_11 = arith.constant 0 : index
    %c0_12 = arith.constant 0 : index
    %11 = vector.load %arg6[%c0_10, %c0_11, %c0_12] : memref<2x256x128xf32, #tpu.memory_space<vmem>>, vector<2x256x128xf32>
    tpu.vector_store %arg6[%c0_10, %c0_11, %c0_12], %10 {strides = array<i32>} : memref<2x256x128xf32, #tpu.memory_space<vmem>>, vector<2x256x128xf32>,
    return
  }
  func.func @transform_0(%arg0: i32, %arg1: i32) -> (i32, i32, i32) {
    %c0_i32 = arith.constant 0 : i32
    %c0_i32_0 = arith.constant 0 : i32
    return %arg0, %arg1, %c0_i32 : i32, i32, i32
  }
  func.func @transform_1(%arg0: i32, %arg1: i32) -> (i32, i32, i32) {
    %c0_i32 = arith.constant 0 : i32
    %c0_i32_0 = arith.constant 0 : i32
    %c0_i32_1 = arith.constant 0 : i32
    return %arg0, %c0_i32, %c0_i32_0 : i32, i32, i32
  }
  func.func @transform_2(%arg0: i32, %arg1: i32) -> (i32, i32, i32) {
    %c0_i32 = arith.constant 0 : i32
    %c0_i32_0 = arith.constant 0 : i32
    %c0_i32_1 = arith.constant 0 : i32
    return %arg0, %c0_i32, %c0_i32_0 : i32, i32, i32
  }
  func.func @transform_3(%arg0: i32, %arg1: i32) -> (i32, i32) {
    %c0_i32 = arith.constant 0 : i32
    %c0_i32_0 = arith.constant 0 : i32
    %c0_i32_1 = arith.constant 0 : i32
    return %c0_i32, %c0_i32_0 : i32, i32
  }
  func.func @transform_4(%arg0: i32, %arg1: i32) -> (i32, i32, i32) {
    %c0_i32 = arith.constant 0 : i32
    %c0_i32_0 = arith.constant 0 : i32
    return %arg0, %arg1, %c0_i32 : i32, i32, i32
  }
}

</mosaic_0001>

<llo_original>
// kernel: tpu_custom_call.1
$region0: #{tpu_custom_call.1}
  #allocation0 [shape = 'u32[]', space=smem, size = 0x4, offset = 0x4, fixed_abs, tag = 'smem constant byte address 0x4 - core index']
  #allocation1 [shape = 'u32[144,128]{1,0:T(1,128)}', space=vmem, size = 0x12000, scoped, tag = 'internal scratch']
  %s0 = inlined_call_operand.vmem [shape: f32[2,256,4], index: 0, kind: input, shape index: {}]
  %s1 = inlined_call_operand.vmem [shape: f32[2,1,128], index: 1, kind: input, shape index: {}]
  %s2 = inlined_call_operand.vmem [shape: f32[2,1,128], index: 2, kind: input, shape index: {}]
  %s3 = inlined_call_operand.vmem [shape: f32[4,128], index: 3, kind: input, shape index: {}]
  %s4 = inlined_call_operand.hbm [shape: f32[2,256,128], index: 4, kind: output, shape index: {}]
  %s5 = sld [smem:[#allocation0]]
  $region26: #{tpu_custom_call.1} parent=0
    _
  %s7 = ssub.s32 1, %s5
  %s8 = scalar_select 0, %s7, %s5
  $region1: #{tpu_custom_call.1} parent=0
    #allocation2 [shape = 'u8[262144]{0}', space=vmem, size = 0x40000, scoped, tag = 'output window, operand 0, single buffered']
    #allocation3 [shape = 's32[1]{0}', space=sflag, size = 0x4, scoped, tag = 'scoped memory for tpu_custom_call.1']
    %9 = vsyncpa [#allocation3], 0
    // Predicated region
    $region2: #{tpu_custom_call.1} parent=1 // pred_check
      _
    $region3: #{tpu_custom_call.1} parent=1 // pred_check_branch
      %11 = sbr.rel (0) target = $region5
    $region4: #{tpu_custom_call.1} parent=1 // pred_region
      _
    $region5: #{tpu_custom_call.1} parent=1 // pred_fallthru
      _
    // Predicated region
    $region6: #{tpu_custom_call.1} parent=1 // pred_check
      _
    $region7: #{tpu_custom_call.1} parent=1 // pred_check_branch
      %13 = sbr.rel (0) target = $region9
    $region8: #{tpu_custom_call.1} parent=1 // pred_region
      _
    $region9: #{tpu_custom_call.1} parent=1 // pred_fallthru
      _
    // Predicated region
    $region10: #{tpu_custom_call.1} parent=1 // pred_check
      _
    $region11: #{tpu_custom_call.1} parent=1 // pred_check_branch
      %15 = sbr.rel (0) target = $region13
    $region12: #{tpu_custom_call.1} parent=1 // pred_region
      _
    $region13: #{tpu_custom_call.1} parent=1 // pred_fallthru
      _
    // Predicated region
    $region14: #{tpu_custom_call.1} parent=1 // pred_check
      _
    $region15: #{tpu_custom_call.1} parent=1 // pred_check_branch
      %17 = sbr.rel (0) target = $region17
    $region16: #{tpu_custom_call.1} parent=1 // pred_region
      _
    $region17: #{tpu_custom_call.1} parent=1 // pred_fallthru
      _
    %v18 = vld [vmem:[%s1] sm:$0x1]
    %v19 = vld [vmem:[%s1 + $0x1] sm:$0x1]
    %v20 = vld [vmem:[%s2] sm:$0x1]
    %v21 = vld [vmem:[%s2 + $0x1] sm:$0x1]
    %v22 = vld [vmem:[%s0] sm:$0xff]
    %v23 = vld [vmem:[%s0 + $0x8] sm:$0xff]
    %v24 = vld [vmem:[%s0 + $0x10] sm:$0xff]
    %v25 = vld [vmem:[%s0 + $0x18] sm:$0xff]
    %v26 = vld [vmem:[%s0 + $0x20] sm:$0xff]
    %v27 = vld [vmem:[%s0 + $0x28] sm:$0xff]
    %v28 = vld [vmem:[%s0 + $0x30] sm:$0xff]
    %v29 = vld [vmem:[%s0 + $0x38] sm:$0xff]
    %v30 = vld [vmem:[%s0 + $0x40] sm:$0xff]
    %v31 = vld [vmem:[%s0 + $0x48] sm:$0xff]
    %v32 = vld [vmem:[%s0 + $0x50] sm:$0xff]
    %v33 = vld [vmem:[%s0 + $0x58] sm:$0xff]
    %v34 = vld [vmem:[%s0 + $0x60] sm:$0xff]
    %v35 = vld [vmem:[%s0 + $0x68] sm:$0xff]
    %v36 = vld [vmem:[%s0 + $0x70] sm:$0xff]
    %v37 = vld [vmem:[%s0 + $0x78] sm:$0xff]
    %v38 = vld [vmem:[%s0 + $0x80] sm:$0xff]
    %v39 = vld [vmem:[%s0 + $0x88] sm:$0xff]
    %v40 = vld [vmem:[%s0 + $0x90] sm:$0xff]
    %v41 = vld [vmem:[%s0 + $0x98] sm:$0xff]
    %v42 = vld [vmem:[%s0 + $0xa0] sm:$0xff]
    %v43 = vld [vmem:[%s0 + $0xa8] sm:$0xff]
    %v44 = vld [vmem:[%s0 + $0xb0] sm:$0xff]
    %v45 = vld [vmem:[%s0 + $0xb8] sm:$0xff]
    %v46 = vld [vmem:[%s0 + $0xc0] sm:$0xff]
    %v47 = vld [vmem:[%s0 + $0xc8] sm:$0xff]
    %v48 = vld [vmem:[%s0 + $0xd0] sm:$0xff]
    %v49 = vld [vmem:[%s0 + $0xd8] sm:$0xff]
    %v50 = vld [vmem:[%s0 + $0xe0] sm:$0xff]
    %v51 = vld [vmem:[%s0 + $0xe8] sm:$0xff]
    %v52 = vld [vmem:[%s0 + $0xf0] sm:$0xff]
    %v53 = vld [vmem:[%s0 + $0xf8] sm:$0xff]
    %v54 = vld [vmem:[%s0 + $0x100] sm:$0xff]
    %v55 = vld [vmem:[%s0 + $0x108] sm:$0xff]
    %v56 = vld [vmem:[%s0 + $0x110] sm:$0xff]
    %v57 = vld [vmem:[%s0 + $0x118] sm:$0xff]
    %v58 = vld [vmem:[%s0 + $0x120] sm:$0xff]
    %v59 = vld [vmem:[%s0 + $0x128] sm:$0xff]
    %v60 = vld [vmem:[%s0 + $0x130] sm:$0xff]
    %v61 = vld [vmem:[%s0 + $0x138] sm:$0xff]
    %v62 = vld [vmem:[%s0 + $0x140] sm:$0xff]
    %v63 = vld [vmem:[%s0 + $0x148] sm:$0xff]
    %v64 = vld [vmem:[%s0 + $0x150] sm:$0xff]
    %v65 = vld [vmem:[%s0 + $0x158] sm:$0xff]
    %v66 = vld [vmem:[%s0 + $0x160] sm:$0xff]
    %v67 = vld [vmem:[%s0 + $0x168] sm:$0xff]
    %v68 = vld [vmem:[%s0 + $0x170] sm:$0xff]
    %v69 = vld [vmem:[%s0 + $0x178] sm:$0xff]
    %v70 = vld [vmem:[%s0 + $0x180] sm:$0xff]
    %v71 = vld [vmem:[%s0 + $0x188] sm:$0xff]
    %v72 = vld [vmem:[%s0 + $0x190] sm:$0xff]
    %v73 = vld [vmem:[%s0 + $0x198] sm:$0xff]
    %v74 = vld [vmem:[%s0 + $0x1a0] sm:$0xff]
    %v75 = vld [vmem:[%s0 + $0x1a8] sm:$0xff]
    %v76 = vld [vmem:[%s0 + $0x1b0] sm:$0xff]
    %v77 = vld [vmem:[%s0 + $0x1b8] sm:$0xff]
    %v78 = vld [vmem:[%s0 + $0x1c0] sm:$0xff]
    %v79 = vld [vmem:[%s0 + $0x1c8] sm:$0xff]
    %v80 = vld [vmem:[%s0 + $0x1d0] sm:$0xff]
    %v81 = vld [vmem:[%s0 + $0x1d8] sm:$0xff]
    %v82 = vld [vmem:[%s0 + $0x1e0] sm:$0xff]
    %v83 = vld [vmem:[%s0 + $0x1e8] sm:$0xff]
    %v84 = vld [vmem:[%s0 + $0x1f0] sm:$0xff]
    %v85 = vld [vmem:[%s0 + $0x1f8] sm:$0xff]
    %v86 = vld [vmem:[%s3] sm:$0xf]
    %vm87 = vcmask 31744
    %v89 = vsel %vm87, %v22, 0
    %v92 = vsel %vm87, %v23, 0
    %v95 = vsel %vm87, %v24, 0
    %v98 = vsel %vm87, %v25, 0
    %v101 = vsel %vm87, %v26, 0
    %v104 = vsel %vm87, %v27, 0
    %v107 = vsel %vm87, %v28, 0
    %v110 = vsel %vm87, %v29, 0
    %v113 = vsel %vm87, %v30, 0
    %v116 = vsel %vm87, %v31, 0
    %v119 = vsel %vm87, %v32, 0
    %v122 = vsel %vm87, %v33, 0
    %v125 = vsel %vm87, %v34, 0
    %v128 = vsel %vm87, %v35, 0
    %v131 = vsel %vm87, %v36, 0
    %v134 = vsel %vm87, %v37, 0
    %v137 = vsel %vm87, %v38, 0
    %v140 = vsel %vm87, %v39, 0
    %v143 = vsel %vm87, %v40, 0
    %v146 = vsel %vm87, %v41, 0
    %v149 = vsel %vm87, %v42, 0
    %v152 = vsel %vm87, %v43, 0
    %v155 = vsel %vm87, %v44, 0
    %v158 = vsel %vm87, %v45, 0
    %v161 = vsel %vm87, %v46, 0
    %v164 = vsel %vm87, %v47, 0
    %v167 = vsel %vm87, %v48, 0
    %v170 = vsel %vm87, %v49, 0
    %v173 = vsel %vm87, %v50, 0
    %v176 = vsel %vm87, %v51, 0
    %v179 = vsel %vm87, %v52, 0
    %v182 = vsel %vm87, %v53, 0
    %v185 = vsel %vm87, %v54, 0
    %v188 = vsel %vm87, %v55, 0
    %v191 = vsel %vm87, %v56, 0
    %v194 = vsel %vm87, %v57, 0
    %v197 = vsel %vm87, %v58, 0
    %v200 = vsel %vm87, %v59, 0
    %v203 = vsel %vm87, %v60, 0
    %v206 = vsel %vm87, %v61, 0
    %v209 = vsel %vm87, %v62, 0
    %v212 = vsel %vm87, %v63, 0
    %v215 = vsel %vm87, %v64, 0
    %v218 = vsel %vm87, %v65, 0
    %v221 = vsel %vm87, %v66, 0
    %v224 = vsel %vm87, %v67, 0
    %v227 = vsel %vm87, %v68, 0
    %v230 = vsel %vm87, %v69, 0
    %v233 = vsel %vm87, %v70, 0
    %v236 = vsel %vm87, %v71, 0
    %v239 = vsel %vm87, %v72, 0
    %v242 = vsel %vm87, %v73, 0
    %v245 = vsel %vm87, %v74, 0
    %v248 = vsel %vm87, %v75, 0
    %v251 = vsel %vm87, %v76, 0
    %v254 = vsel %vm87, %v77, 0
    %v257 = vsel %vm87, %v78, 0
    %v260 = vsel %vm87, %v79, 0
    %v263 = vsel %vm87, %v80, 0
    %v266 = vsel %vm87, %v81, 0
    %v269 = vsel %vm87, %v82, 0
    %v272 = vsel %vm87, %v83, 0
    %v275 = vsel %vm87, %v84, 0
    %v278 = vsel %vm87, %v85, 0
    %vm280 = vcmask 1043456
    %v282 = vsel %vm280, %v86, 0
    %284 = vmatprep.subr.mxu0 0.0
    %285 = vmatpush1.msra.mxu0 %v282
    %286 = vmatprep.subr.mxu0 0.0
    %287 = vmatpush1.msra.mxu0 0.0
    %288 = vmatprep.subr.mxu0 0.0
    %289 = vmatpush1.msra.mxu0 0.0
    %290 = vmatprep.subr.mxu0 0.0
    %291 = vmatpush1.msra.mxu0 0.0
    %292 = vmatprep.subr.mxu0 0.0
    %293 = vmatpush1.msra.mxu0 0.0
    %294 = vmatprep.subr.mxu0 0.0
    %295 = vmatpush1.msra.mxu0 0.0
    %296 = vmatprep.subr.mxu0 0.0
    %297 = vmatpush1.msra.mxu0 0.0
    %298 = vmatprep.subr.mxu0 0.0
    %299 = vmatpush1.msra.mxu0 0.0
    %300 = vmatprep.subr.mxu0 0.0
    %301 = vmatpush1.msra.mxu0 0.0
    %302 = vmatprep.subr.mxu0 0.0
    %303 = vmatpush1.msra.mxu0 0.0
    %304 = vmatprep.subr.mxu0 0.0
    %305 = vmatpush1.msra.mxu0 0.0
    %306 = vmatprep.subr.mxu0 0.0
    %307 = vmatpush1.msra.mxu0 0.0
    %308 = vmatprep.subr.mxu0 0.0
    %309 = vmatpush1.msra.mxu0 0.0
    %310 = vmatprep.subr.mxu0 0.0
    %311 = vmatpush1.msra.mxu0 0.0
    %312 = vmatprep.subr.mxu0 0.0
    %313 = vmatpush1.msra.mxu0 0.0
    %314 = vmatprep.subr.mxu0 0.0
    %315 = vmatpush1.msra.mxu0 0.0
    %316 = vmatprep.subr.mxu0 0.0
    %317 = vmatpush1.msra.mxu0 0.0
    %318 = vmatprep.subr.mxu0 0.0
    %319 = vmatpush1.msra.mxu0 0.0
    %320 = vmatprep.subr.mxu0 0.0
    %321 = vmatpush1.msra.mxu0 0.0
    %322 = vmatprep.subr.mxu0 0.0
    %323 = vmatpush1.msra.mxu0 0.0
    %324 = vmatprep.subr.mxu0 0.0
    %325 = vmatpush1.msra.mxu0 0.0
    %326 = vmatprep.subr.mxu0 0.0
    %327 = vmatpush1.msra.mxu0 0.0
    %328 = vmatprep.subr.mxu0 0.0
    %329 = vmatpush1.msra.mxu0 0.0
    %330 = vmatprep.subr.mxu0 0.0
    %331 = vmatpush1.msra.mxu0 0.0
    %332 = vmatprep.subr.mxu0 0.0
    %333 = vmatpush1.msra.mxu0 0.0
    %334 = vmatprep.subr.mxu0 0.0
    %335 = vmatpush1.msra.mxu0 0.0
    %336 = vmatprep.subr.mxu0 0.0
    %337 = vmatpush1.msra.mxu0 0.0
    %338 = vmatprep.subr.mxu0 0.0
    %339 = vmatpush1.msra.mxu0 0.0
    %340 = vmatprep.subr.mxu0 0.0
    %341 = vmatpush1.msra.mxu0 0.0
    %342 = vmatprep.subr.mxu0 0.0
    %343 = vmatpush1.msra.mxu0 0.0
    %344 = vmatprep.subr.mxu0 0.0
    %345 = vmatpush1.msra.mxu0 0.0
    %346 = vmatprep.subr.mxu0 0.0
    %347 = vmatpush1.msra.mxu0 0.0
    %348 = vmatprep.mubr.f32.mxu0 0.0
    %349 = vmatmul.mubr.f32.gmra.mrb[0].mxu0 %v89
    %v350 = vpop.f32.mrb[0].mxu0
    %v351 = vadd.f32 0.0, %v350
    %v352 = vpop.f32.mrb[0].mxu0
    %353 = vmatprep.mubr.f32.mxu0 0.0
    %354 = vmatmul.mubr.f32.gmra.mrb[0].mxu0 %v92
    %v355 = vpop.f32.mrb[0].mxu0
    %v356 = vadd.f32 0.0, %v355
    %v357 = vpop.f32.mrb[0].mxu0
    %358 = vmatprep.mubr.f32.mxu0 0.0
    %359 = vmatmul.mubr.f32.gmra.mrb[0].mxu0 %v95
    %v360 = vpop.f32.mrb[0].mxu0
    %v361 = vadd.f32 0.0, %v360
    %v362 = vpop.f32.mrb[0].mxu0
    %363 = vmatprep.mubr.f32.mxu0 0.0
    %364 = vmatmul.mubr.f32.gmra.mrb[0].mxu0 %v98
    %v365 = vpop.f32.mrb[0].mxu0
    %v366 = vadd.f32 0.0, %v365
    %v367 = vpop.f32.mrb[0].mxu0
    %368 = vmatprep.mubr.f32.mxu0 0.0
    %369 = vmatmul.mubr.f32.gmra.mrb[0].mxu0 %v101
    %v370 = vpop.f32.mrb[0].mxu0
    %v371 = vadd.f32 0.0, %v370
    %v372 = vpop.f32.mrb[0].mxu0
    %373 = vmatprep.mubr.f32.mxu0 0.0
    %374 = vmatmul.mubr.f32.gmra.mrb[0].mxu0 %v104
    %v375 = vpop.f32.mrb[0].mxu0
    %v376 = vadd.f32 0.0, %v375
    %v377 = vpop.f32.mrb[0].mxu0
    %378 = vmatprep.mubr.f32.mxu0 0.0
    %379 = vmatmul.mubr.f32.gmra.mrb[0].mxu0 %v107
    %v380 = vpop.f32.mrb[0].mxu0
    %v381 = vadd.f32 0.0, %v380
    %v382 = vpop.f32.mrb[0].mxu0
    %383 = vmatprep.mubr.f32.mxu0 0.0
    %384 = vmatmul.mubr.f32.gmra.mrb[0].mxu0 %v110
    %v385 = vpop.f32.mrb[0].mxu0
    %v386 = vadd.f32 0.0, %v385
    %v387 = vpop.f32.mrb[0].mxu0
    %388 = vmatprep.mubr.f32.mxu0 0.0
    %389 = vmatmul.mubr.f32.gmra.mrb[0].mxu0 %v113
    %v390 = vpop.f32.mrb[0].mxu0
    %v391 = vadd.f32 0.0, %v390
    %v392 = vpop.f32.mrb[0].mxu0
    %393 = vmatprep.mubr.f32.mxu0 0.0
    %394 = vmatmul.mubr.f32.gmra.mrb[0].mxu0 %v116
    %v395 = vpop.f32.mrb[0].mxu0
    %v396 = vadd.f32 0.0, %v395
    %v397 = vpop.f32.mrb[0].mxu0
    %398 = vmatprep.mubr.f32.mxu0 0.0
    %399 = vmatmul.mubr.f32.gmra.mrb[0].mxu0 %v119
    %v400 = vpop.f32.mrb[0].mxu0
    %v401 = vadd.f32 0.0, %v400
    %v402 = vpop.f32.mrb[0].mxu0
    %403 = vmatprep.mubr.f32.mxu0 0.0
    %404 = vmatmul.mubr.f32.gmra.mrb[0].mxu0 %v122
    %v405 = vpop.f32.mrb[0].mxu0
    %v406 = vadd.f32 0.0, %v405
    %v407 = vpop.f32.mrb[0].mxu0
    %408 = vmatprep.mubr.f32.mxu0 0.0
    %409 = vmatmul.mubr.f32.gmra.mrb[0].mxu0 %v125
    %v410 = vpop.f32.mrb[0].mxu0
    %v411 = vadd.f32 0.0, %v410
    %v412 = vpop.f32.mrb[0].mxu0
    %413 = vmatprep.mubr.f32.mxu0 0.0
    %414 = vmatmul.mubr.f32.gmra.mrb[0].mxu0 %v128
    %v415 = vpop.f32.mrb[0].mxu0
    %v416 = vadd.f32 0.0, %v415
    %v417 = vpop.f32.mrb[0].mxu0
    %418 = vmatprep.mubr.f32.mxu0 0.0
    %419 = vmatmul.mubr.f32.gmra.mrb[0].mxu0 %v131
    %v420 = vpop.f32.mrb[0].mxu0
    %v421 = vadd.f32 0.0, %v420
    %v422 = vpop.f32.mrb[0].mxu0
    %423 = vmatprep.mubr.f32.mxu0 0.0
    %424 = vmatmul.mubr.f32.gmra.mrb[0].mxu0 %v134
    %v425 = vpop.f32.mrb[0].mxu0
    %v426 = vadd.f32 0.0, %v425
    %v427 = vpop.f32.mrb[0].mxu0
    %428 = vmatprep.mubr.f32.mxu0 0.0
    %429 = vmatmul.mubr.f32.gmra.mrb[0].mxu0 %v137
    %v430 = vpop.f32.mrb[0].mxu0
    %v431 = vadd.f32 0.0, %v430
    %v432 = vpop.f32.mrb[0].mxu0
    %433 = vmatprep.mubr.f32.mxu0 0.0
    %434 = vmatmul.mubr.f32.gmra.mrb[0].mxu0 %v140
    %v435 = vpop.f32.mrb[0].mxu0
    %v436 = vadd.f32 0.0, %v435
    %v437 = vpop.f32.mrb[0].mxu0
    %438 = vmatprep.mubr.f32.mxu0 0.0
    %439 = vmatmul.mubr.f32.gmra.mrb[0].mxu0 %v143
    %v440 = vpop.f32.mrb[0].mxu0
    %v441 = vadd.f32 0.0, %v440
    %v442 = vpop.f32.mrb[0].mxu0
    %443 = vmatprep.mubr.f32.mxu0 0.0
    %444 = vmatmul.mubr.f32.gmra.mrb[0].mxu0 %v146
    %v445 = vpop.f32.mrb[0].mxu0
    %v446 = vadd.f32 0.0, %v445
    %v447 = vpop.f32.mrb[0].mxu0
    %448 = vmatprep.mubr.f32.mxu0 0.0
    %449 = vmatmul.mubr.f32.gmra.mrb[0].mxu0 %v149
    %v450 = vpop.f32.mrb[0].mxu0
    %v451 = vadd.f32 0.0, %v450
    %v452 = vpop.f32.mrb[0].mxu0
    %453 = vmatprep.mubr.f32.mxu0 0.0
    %454 = vmatmul.mubr.f32.gmra.mrb[0].mxu0 %v152
    %v455 = vpop.f32.mrb[0].mxu0
    %v456 = vadd.f32 0.0, %v455
    %v457 = vpop.f32.mrb[0].mxu0
    %458 = vmatprep.mubr.f32.mxu0 0.0
    %459 = vmatmul.mubr.f32.gmra.mrb[0].mxu0 %v155
    %v460 = vpop.f32.mrb[0].mxu0
    %v461 = vadd.f32 0.0, %v460
    %v462 = vpop.f32.mrb[0].mxu0
    %463 = vmatprep.mubr.f32.mxu0 0.0
    %464 = vmatmul.mubr.f32.gmra.mrb[0].mxu0 %v158
    %v465 = vpop.f32.mrb[0].mxu0
    %v466 = vadd.f32 0.0, %v465
    %v467 = vpop.f32.mrb[0].mxu0
    %468 = vmatprep.mubr.f32.mxu0 0.0
    %469 = vmatmul.mubr.f32.gmra.mrb[0].mxu0 %v161
    %v470 = vpop.f32.mrb[0].mxu0
    %v471 = vadd.f32 0.0, %v470
    %v472 = vpop.f32.mrb[0].mxu0
    %473 = vmatprep.mubr.f32.mxu0 0.0
    %474 = vmatmul.mubr.f32.gmra.mrb[0].mxu0 %v164
    %v475 = vpop.f32.mrb[0].mxu0
    %v476 = vadd.f32 0.0, %v475
    %v477 = vpop.f32.mrb[0].mxu0
    %478 = vmatprep.mubr.f32.mxu0 0.0
    %479 = vmatmul.mubr.f32.gmra.mrb[0].mxu0 %v167
    %v480 = vpop.f32.mrb[0].mxu0
    %v481 = vadd.f32 0.0, %v480
    %v482 = vpop.f32.mrb[0].mxu0
    %483 = vmatprep.mubr.f32.mxu0 0.0
    %484 = vmatmul.mubr.f32.gmra.mrb[0].mxu0 %v170
    %v485 = vpop.f32.mrb[0].mxu0
    %v486 = vadd.f32 0.0, %v485
    %v487 = vpop.f32.mrb[0].mxu0
    %488 = vmatprep.mubr.f32.mxu0 0.0
    %489 = vmatmul.mubr.f32.gmra.mrb[0].mxu0 %v173
    %v490 = vpop.f32.mrb[0].mxu0
    %v491 = vadd.f32 0.0, %v490
    %v492 = vpop.f32.mrb[0].mxu0
    %493 = vmatprep.mubr.f32.mxu0 0.0
    %494 = vmatmul.mubr.f32.gmra.mrb[0].mxu0 %v176
    %v495 = vpop.f32.mrb[0].mxu0
    %v496 = vadd.f32 0.0, %v495
    %v497 = vpop.f32.mrb[0].mxu0
    %498 = vmatprep.mubr.f32.mxu0 0.0
    %499 = vmatmul.mubr.f32.gmra.mrb[0].mxu0 %v179
    %v500 = vpop.f32.mrb[0].mxu0
    %v501 = vadd.f32 0.0, %v500
    %v502 = vpop.f32.mrb[0].mxu0
    %503 = vmatprep.mubr.f32.mxu0 0.0
    %504 = vmatmul.mubr.f32.gmra.mrb[0].mxu0 %v182
    %v505 = vpop.f32.mrb[0].mxu0
    %v506 = vadd.f32 0.0, %v505
    %v507 = vpop.f32.mrb[0].mxu0
    %508 = vmatprep.mubr.f32.mxu0 0.0
    %509 = vmatmul.mubr.f32.gmra.mrb[0].mxu0 %v185
    %v510 = vpop.f32.mrb[0].mxu0
    %v511 = vadd.f32 0.0, %v510
    %v512 = vpop.f32.mrb[0].mxu0
    %513 = vmatprep.mubr.f32.mxu0 0.0
    %514 = vmatmul.mubr.f32.gmra.mrb[0].mxu0 %v188
    %v515 = vpop.f32.mrb[0].mxu0
    %v516 = vadd.f32 0.0, %v515
    %v517 = vpop.f32.mrb[0].mxu0
    %518 = vmatprep.mubr.f32.mxu0 0.0
    %519 = vmatmul.mubr.f32.gmra.mrb[0].mxu0 %v191
    %v520 = vpop.f32.mrb[0].mxu0
    %v521 = vadd.f32 0.0, %v520
    %v522 = vpop.f32.mrb[0].mxu0
    %523 = vmatprep.mubr.f32.mxu0 0.0
    %524 = vmatmul.mubr.f32.gmra.mrb[0].mxu0 %v194
    %v525 = vpop.f32.mrb[0].mxu0
    %v526 = vadd.f32 0.0, %v525
    %v527 = vpop.f32.mrb[0].mxu0
    %528 = vmatprep.mubr.f32.mxu0 0.0
    %529 = vmatmul.mubr.f32.gmra.mrb[0].mxu0 %v197
    %v530 = vpop.f32.mrb[0].mxu0
    %v531 = vadd.f32 0.0, %v530
    %v532 = vpop.f32.mrb[0].mxu0
    %533 = vmatprep.mubr.f32.mxu0 0.0
    %534 = vmatmul.mubr.f32.gmra.mrb[0].mxu0 %v200
    %v535 = vpop.f32.mrb[0].mxu0
    %v536 = vadd.f32 0.0, %v535
    %v537 = vpop.f32.mrb[0].mxu0
    %538 = vmatprep.mubr.f32.mxu0 0.0
    %539 = vmatmul.mubr.f32.gmra.mrb[0].mxu0 %v203
    %v540 = vpop.f32.mrb[0].mxu0
    %v541 = vadd.f32 0.0, %v540
    %v542 = vpop.f32.mrb[0].mxu0
    %543 = vmatprep.mubr.f32.mxu0 0.0
    %544 = vmatmul.mubr.f32.gmra.mrb[0].mxu0 %v206
    %v545 = vpop.f32.mrb[0].mxu0
    %v546 = vadd.f32 0.0, %v545
    %v547 = vpop.f32.mrb[0].mxu0
    %548 = vmatprep.mubr.f32.mxu0 0.0
    %549 = vmatmul.mubr.f32.gmra.mrb[0].mxu0 %v209
    %v550 = vpop.f32.mrb[0].mxu0
    %v551 = vadd.f32 0.0, %v550
    %v552 = vpop.f32.mrb[0].mxu0
    %553 = vmatprep.mubr.f32.mxu0 0.0
    %554 = vmatmul.mubr.f32.gmra.mrb[0].mxu0 %v212
    %v555 = vpop.f32.mrb[0].mxu0
    %v556 = vadd.f32 0.0, %v555
    %v557 = vpop.f32.mrb[0].mxu0
    %558 = vmatprep.mubr.f32.mxu0 0.0
    %559 = vmatmul.mubr.f32.gmra.mrb[0].mxu0 %v215
    %v560 = vpop.f32.mrb[0].mxu0
    %v561 = vadd.f32 0.0, %v560
    %v562 = vpop.f32.mrb[0].mxu0
    %563 = vmatprep.mubr.f32.mxu0 0.0
    %564 = vmatmul.mubr.f32.gmra.mrb[0].mxu0 %v218
    %v565 = vpop.f32.mrb[0].mxu0
    %v566 = vadd.f32 0.0, %v565
    %v567 = vpop.f32.mrb[0].mxu0
    %568 = vmatprep.mubr.f32.mxu0 0.0
    %569 = vmatmul.mubr.f32.gmra.mrb[0].mxu0 %v221
    %v570 = vpop.f32.mrb[0].mxu0
    %v571 = vadd.f32 0.0, %v570
    %v572 = vpop.f32.mrb[0].mxu0
    %573 = vmatprep.mubr.f32.mxu0 0.0
    %574 = vmatmul.mubr.f32.gmra.mrb[0].mxu0 %v224
    %v575 = vpop.f32.mrb[0].mxu0
    %v576 = vadd.f32 0.0, %v575
    %v577 = vpop.f32.mrb[0].mxu0
    %578 = vmatprep.mubr.f32.mxu0 0.0
    %579 = vmatmul.mubr.f32.gmra.mrb[0].mxu0 %v227
    %v580 = vpop.f32.mrb[0].mxu0
    %v581 = vadd.f32 0.0, %v580
    %v582 = vpop.f32.mrb[0].mxu0
    %583 = vmatprep.mubr.f32.mxu0 0.0
    %584 = vmatmul.mubr.f32.gmra.mrb[0].mxu0 %v230
    %v585 = vpop.f32.mrb[0].mxu0
    %v586 = vadd.f32 0.0, %v585
    %v587 = vpop.f32.mrb[0].mxu0
    %588 = vmatprep.mubr.f32.mxu0 0.0
    %589 = vmatmul.mubr.f32.gmra.mrb[0].mxu0 %v233
    %v590 = vpop.f32.mrb[0].mxu0
    %v591 = vadd.f32 0.0, %v590
    %v592 = vpop.f32.mrb[0].mxu0
    %593 = vmatprep.mubr.f32.mxu0 0.0
    %594 = vmatmul.mubr.f32.gmra.mrb[0].mxu0 %v236
    %v595 = vpop.f32.mrb[0].mxu0
    %v596 = vadd.f32 0.0, %v595
    %v597 = vpop.f32.mrb[0].mxu0
    %598 = vmatprep.mubr.f32.mxu0 0.0
    %599 = vmatmul.mubr.f32.gmra.mrb[0].mxu0 %v239
    %v600 = vpop.f32.mrb[0].mxu0
    %v601 = vadd.f32 0.0, %v600
    %v602 = vpop.f32.mrb[0].mxu0
    %603 = vmatprep.mubr.f32.mxu0 0.0
    %604 = vmatmul.mubr.f32.gmra.mrb[0].mxu0 %v242
    %v605 = vpop.f32.mrb[0].mxu0
    %v606 = vadd.f32 0.0, %v605
    %v607 = vpop.f32.mrb[0].mxu0
    %608 = vmatprep.mubr.f32.mxu0 0.0
    %609 = vmatmul.mubr.f32.gmra.mrb[0].mxu0 %v245
    %v610 = vpop.f32.mrb[0].mxu0
    %v611 = vadd.f32 0.0, %v610
    %v612 = vpop.f32.mrb[0].mxu0
    %613 = vmatprep.mubr.f32.mxu0 0.0
    %614 = vmatmul.mubr.f32.gmra.mrb[0].mxu0 %v248
    %v615 = vpop.f32.mrb[0].mxu0
    %v616 = vadd.f32 0.0, %v615
    %v617 = vpop.f32.mrb[0].mxu0
    %618 = vmatprep.mubr.f32.mxu0 0.0
    %619 = vmatmul.mubr.f32.gmra.mrb[0].mxu0 %v251
    %v620 = vpop.f32.mrb[0].mxu0
    %v621 = vadd.f32 0.0, %v620
    %v622 = vpop.f32.mrb[0].mxu0
    %623 = vmatprep.mubr.f32.mxu0 0.0
    %624 = vmatmul.mubr.f32.gmra.mrb[0].mxu0 %v254
    %v625 = vpop.f32.mrb[0].mxu0
    %v626 = vadd.f32 0.0, %v625
    %v627 = vpop.f32.mrb[0].mxu0
    %628 = vmatprep.mubr.f32.mxu0 0.0
    %629 = vmatmul.mubr.f32.gmra.mrb[0].mxu0 %v257
    %v630 = vpop.f32.mrb[0].mxu0
    %v631 = vadd.f32 0.0, %v630
    %v632 = vpop.f32.mrb[0].mxu0
    %633 = vmatprep.mubr.f32.mxu0 0.0
    %634 = vmatmul.mubr.f32.gmra.mrb[0].mxu0 %v260
    %v635 = vpop.f32.mrb[0].mxu0
    %v636 = vadd.f32 0.0, %v635
    %v637 = vpop.f32.mrb[0].mxu0
    %638 = vmatprep.mubr.f32.mxu0 0.0
    %639 = vmatmul.mubr.f32.gmra.mrb[0].mxu0 %v263
    %v640 = vpop.f32.mrb[0].mxu0
    %v641 = vadd.f32 0.0, %v640
    %v642 = vpop.f32.mrb[0].mxu0
    %643 = vmatprep.mubr.f32.mxu0 0.0
    %644 = vmatmul.mubr.f32.gmra.mrb[0].mxu0 %v266
    %v645 = vpop.f32.mrb[0].mxu0
    %v646 = vadd.f32 0.0, %v645
    %v647 = vpop.f32.mrb[0].mxu0
    %648 = vmatprep.mubr.f32.mxu0 0.0
    %649 = vmatmul.mubr.f32.gmra.mrb[0].mxu0 %v269
    %v650 = vpop.f32.mrb[0].mxu0
    %v651 = vadd.f32 0.0, %v650
    %v652 = vpop.f32.mrb[0].mxu0
    %653 = vmatprep.mubr.f32.mxu0 0.0
    %654 = vmatmul.mubr.f32.gmra.mrb[0].mxu0 %v272
    %v655 = vpop.f32.mrb[0].mxu0
    %v656 = vadd.f32 0.0, %v655
    %v657 = vpop.f32.mrb[0].mxu0
    %658 = vmatprep.mubr.f32.mxu0 0.0
    %659 = vmatmul.mubr.f32.gmra.mrb[0].mxu0 %v275
    %v660 = vpop.f32.mrb[0].mxu0
    %v661 = vadd.f32 0.0, %v660
    %v662 = vpop.f32.mrb[0].mxu0
    %663 = vmatprep.mubr.f32.mxu0 0.0
    %664 = vmatmul.mubr.f32.gmra.mrb[0].mxu0 %v278
    %v665 = vpop.f32.mrb[0].mxu0
    %v666 = vadd.f32 0.0, %v665
    %v667 = vpop.f32.mrb[0].mxu0
    %668 = vdwg.mxu0
    %v671 = vlaneseq
    %v672 = vshrl.u32 %v671, 7
    %v673 = vsub.s32 0, %v672
    %v674 = vrot.slane %v18, %v673
    %v675 = vlaneseq
    %v676 = vshrl.u32 %v675, 7
    %v677 = vsub.s32 0, %v676
    %v678 = vrot.slane %v19, %v677
    %v681 = vmul.f32 %v351, %v674
    %v682 = vmul.f32 %v356, %v674
    %v683 = vmul.f32 %v361, %v674
    %v684 = vmul.f32 %v366, %v674
    %v685 = vmul.f32 %v371, %v674
    %v686 = vmul.f32 %v376, %v674
    %v687 = vmul.f32 %v381, %v674
    %v688 = vmul.f32 %v386, %v674
    %v689 = vmul.f32 %v391, %v674
    %v690 = vmul.f32 %v396, %v674
    %v691 = vmul.f32 %v401, %v674
    %v692 = vmul.f32 %v406, %v674
    %v693 = vmul.f32 %v411, %v674
    %v694 = vmul.f32 %v416, %v674
    %v695 = vmul.f32 %v421, %v674
    %v696 = vmul.f32 %v426, %v674
    %v697 = vmul.f32 %v431, %v674
    %v698 = vmul.f32 %v436, %v674
    %v699 = vmul.f32 %v441, %v674
    %v700 = vmul.f32 %v446, %v674
    %v701 = vmul.f32 %v451, %v674
    %v702 = vmul.f32 %v456, %v674
    %v703 = vmul.f32 %v461, %v674
    %v704 = vmul.f32 %v466, %v674
    %v705 = vmul.f32 %v471, %v674
    %v706 = vmul.f32 %v476, %v674
    %v707 = vmul.f32 %v481, %v674
    %v708 = vmul.f32 %v486, %v674
    %v709 = vmul.f32 %v491, %v674
    %v710 = vmul.f32 %v496, %v674
    %v711 = vmul.f32 %v501, %v674
    %v712 = vmul.f32 %v506, %v674
    %v713 = vmul.f32 %v511, %v678
    %v714 = vmul.f32 %v516, %v678
    %v715 = vmul.f32 %v521, %v678
    %v716 = vmul.f32 %v526, %v678
    %v717 = vmul.f32 %v531, %v678
    %v718 = vmul.f32 %v536, %v678
    %v719 = vmul.f32 %v541, %v678
    %v720 = vmul.f32 %v546, %v678
    %v721 = vmul.f32 %v551, %v678
    %v722 = vmul.f32 %v556, %v678
    %v723 = vmul.f32 %v561, %v678
    %v724 = vmul.f32 %v566, %v678
    %v725 = vmul.f32 %v571, %v678
    %v726 = vmul.f32 %v576, %v678
    %v727 = vmul.f32 %v581, %v678
    %v728 = vmul.f32 %v586, %v678
    %v729 = vmul.f32 %v591, %v678
    %v730 = vmul.f32 %v596, %v678
    %v731 = vmul.f32 %v601, %v678
    %v732 = vmul.f32 %v606, %v678
    %v733 = vmul.f32 %v611, %v678
    %v734 = vmul.f32 %v616, %v678
    %v735 = vmul.f32 %v621, %v678
    %v736 = vmul.f32 %v626, %v678
    %v737 = vmul.f32 %v631, %v678
    %v738 = vmul.f32 %v636, %v678
    %v739 = vmul.f32 %v641, %v678
    %v740 = vmul.f32 %v646, %v678
    %v741 = vmul.f32 %v651, %v678
    %v742 = vmul.f32 %v656, %v678
    %v743 = vmul.f32 %v661, %v678
    %v744 = vmul.f32 %v666, %v678
    %v747 = vlaneseq
    %v748 = vshrl.u32 %v747, 7
    %v749 = vsub.s32 0, %v748
    %v750 = vrot.slane %v20, %v749
    %v751 = vlaneseq
    %v752 = vshrl.u32 %v751, 7
    %v753 = vsub.s32 0, %v752
    %v754 = vrot.slane %v21, %v753
    %v757 = vadd.f32 %v681, %v750
    %v758 = vadd.f32 %v682, %v750
    %v759 = vadd.f32 %v683, %v750
    %v760 = vadd.f32 %v684, %v750
    %v761 = vadd.f32 %v685, %v750
    %v762 = vadd.f32 %v686, %v750
    %v763 = vadd.f32 %v687, %v750
    %v764 = vadd.f32 %v688, %v750
    %v765 = vadd.f32 %v689, %v750
    %v766 = vadd.f32 %v690, %v750
    %v767 = vadd.f32 %v691, %v750
    %v768 = vadd.f32 %v692, %v750
    %v769 = vadd.f32 %v693, %v750
    %v770 = vadd.f32 %v694, %v750
    %v771 = vadd.f32 %v695, %v750
    %v772 = vadd.f32 %v696, %v750
    %v773 = vadd.f32 %v697, %v750
    %v774 = vadd.f32 %v698, %v750
    %v775 = vadd.f32 %v699, %v750
    %v776 = vadd.f32 %v700, %v750
    %v777 = vadd.f32 %v701, %v750
    %v778 = vadd.f32 %v702, %v750
    %v779 = vadd.f32 %v703, %v750
    %v780 = vadd.f32 %v704, %v750
    %v781 = vadd.f32 %v705, %v750
    %v782 = vadd.f32 %v706, %v750
    %v783 = vadd.f32 %v707, %v750
    %v784 = vadd.f32 %v708, %v750
    %v785 = vadd.f32 %v709, %v750
    %v786 = vadd.f32 %v710, %v750
    %v787 = vadd.f32 %v711, %v750
    %v788 = vadd.f32 %v712, %v750
    %v789 = vadd.f32 %v713, %v754
    %v790 = vadd.f32 %v714, %v754
    %v791 = vadd.f32 %v715, %v754
    %v792 = vadd.f32 %v716, %v754
    %v793 = vadd.f32 %v717, %v754
    %v794 = vadd.f32 %v718, %v754
    %v795 = vadd.f32 %v719, %v754
    %v796 = vadd.f32 %v720, %v754
    %v797 = vadd.f32 %v721, %v754
    %v798 = vadd.f32 %v722, %v754
    %v799 = vadd.f32 %v723, %v754
    %v800 = vadd.f32 %v724, %v754
    %v801 = vadd.f32 %v725, %v754
    %v802 = vadd.f32 %v726, %v754
    %v803 = vadd.f32 %v727, %v754
    %v804 = vadd.f32 %v728, %v754
    %v805 = vadd.f32 %v729, %v754
    %v806 = vadd.f32 %v730, %v754
    %v807 = vadd.f32 %v731, %v754
    %v808 = vadd.f32 %v732, %v754
    %v809 = vadd.f32 %v733, %v754
    %v810 = vadd.f32 %v734, %v754
    %v811 = vadd.f32 %v735, %v754
    %v812 = vadd.f32 %v736, %v754
    %v813 = vadd.f32 %v737, %v754
    %v814 = vadd.f32 %v738, %v754
    %v815 = vadd.f32 %v739, %v754
    %v816 = vadd.f32 %v740, %v754
    %v817 = vadd.f32 %v741, %v754
    %v818 = vadd.f32 %v742, %v754
    %v819 = vadd.f32 %v743, %v754
    %v820 = vadd.f32 %v744, %v754
    %821 = vst [vmem:[#allocation2] sm:$0xff] %v757
    %822 = vst [vmem:[#allocation2 + $0x8] sm:$0xff] %v758
    %823 = vst [vmem:[#allocation2 + $0x10] sm:$0xff] %v759
    %824 = vst [vmem:[#allocation2 + $0x18] sm:$0xff] %v760
    %825 = vst [vmem:[#allocation2 + $0x20] sm:$0xff] %v761
    %826 = vst [vmem:[#allocation2 + $0x28] sm:$0xff] %v762
    %827 = vst [vmem:[#allocation2 + $0x30] sm:$0xff] %v763
    %828 = vst [vmem:[#allocation2 + $0x38] sm:$0xff] %v764
    %829 = vst [vmem:[#allocation2 + $0x40] sm:$0xff] %v765
    %830 = vst [vmem:[#allocation2 + $0x48] sm:$0xff] %v766
    %831 = vst [vmem:[#allocation2 + $0x50] sm:$0xff] %v767
    %832 = vst [vmem:[#allocation2 + $0x58] sm:$0xff] %v768
    %833 = vst [vmem:[#allocation2 + $0x60] sm:$0xff] %v769
    %834 = vst [vmem:[#allocation2 + $0x68] sm:$0xff] %v770
    %835 = vst [vmem:[#allocation2 + $0x70] sm:$0xff] %v771
    %836 = vst [vmem:[#allocation2 + $0x78] sm:$0xff] %v772
    %837 = vst [vmem:[#allocation2 + $0x80] sm:$0xff] %v773
    %838 = vst [vmem:[#allocation2 + $0x88] sm:$0xff] %v774
    %839 = vst [vmem:[#allocation2 + $0x90] sm:$0xff] %v775
    %840 = vst [vmem:[#allocation2 + $0x98] sm:$0xff] %v776
    %841 = vst [vmem:[#allocation2 + $0xa0] sm:$0xff] %v777
    %842 = vst [vmem:[#allocation2 + $0xa8] sm:$0xff] %v778
    %843 = vst [vmem:[#allocation2 + $0xb0] sm:$0xff] %v779
    %844 = vst [vmem:[#allocation2 + $0xb8] sm:$0xff] %v780
    %845 = vst [vmem:[#allocation2 + $0xc0] sm:$0xff] %v781
    %846 = vst [vmem:[#allocation2 + $0xc8] sm:$0xff] %v782
    %847 = vst [vmem:[#allocation2 + $0xd0] sm:$0xff] %v783
    %848 = vst [vmem:[#allocation2 + $0xd8] sm:$0xff] %v784
    %849 = vst [vmem:[#allocation2 + $0xe0] sm:$0xff] %v785
    %850 = vst [vmem:[#allocation2 + $0xe8] sm:$0xff] %v786
    %851 = vst [vmem:[#allocation2 + $0xf0] sm:$0xff] %v787
    %852 = vst [vmem:[#allocation2 + $0xf8] sm:$0xff] %v788
    %853 = vst [vmem:[#allocation2 + $0x100] sm:$0xff] %v789
    %854 = vst [vmem:[#allocation2 + $0x108] sm:$0xff] %v790
    %855 = vst [vmem:[#allocation2 + $0x110] sm:$0xff] %v791
    %856 = vst [vmem:[#allocation2 + $0x118] sm:$0xff] %v792
    %857 = vst [vmem:[#allocation2 + $0x120] sm:$0xff] %v793
    %858 = vst [vmem:[#allocation2 + $0x128] sm:$0xff] %v794
    %859 = vst [vmem:[#allocation2 + $0x130] sm:$0xff] %v795
    %860 = vst [vmem:[#allocation2 + $0x138] sm:$0xff] %v796
    %861 = vst [vmem:[#allocation2 + $0x140] sm:$0xff] %v797
    %862 = vst [vmem:[#allocation2 + $0x148] sm:$0xff] %v798
    %863 = vst [vmem:[#allocation2 + $0x150] sm:$0xff] %v799
    %864 = vst [vmem:[#allocation2 + $0x158] sm:$0xff] %v800
    %865 = vst [vmem:[#allocation2 + $0x160] sm:$0xff] %v801
    %866 = vst [vmem:[#allocation2 + $0x168] sm:$0xff] %v802
    %867 = vst [vmem:[#allocation2 + $0x170] sm:$0xff] %v803
    %868 = vst [vmem:[#allocation2 + $0x178] sm:$0xff] %v804
    %869 = vst [vmem:[#allocation2 + $0x180] sm:$0xff] %v805
    %870 = vst [vmem:[#allocation2 + $0x188] sm:$0xff] %v806
    %871 = vst [vmem:[#allocation2 + $0x190] sm:$0xff] %v807
    %872 = vst [vmem:[#allocation2 + $0x198] sm:$0xff] %v808
    %873 = vst [vmem:[#allocation2 + $0x1a0] sm:$0xff] %v809
    %874 = vst [vmem:[#allocation2 + $0x1a8] sm:$0xff] %v810
    %875 = vst [vmem:[#allocation2 + $0x1b0] sm:$0xff] %v811
    %876 = vst [vmem:[#allocation2 + $0x1b8] sm:$0xff] %v812
    %877 = vst [vmem:[#allocation2 + $0x1c0] sm:$0xff] %v813
    %878 = vst [vmem:[#allocation2 + $0x1c8] sm:$0xff] %v814
    %879 = vst [vmem:[#allocation2 + $0x1d0] sm:$0xff] %v815
    %880 = vst [vmem:[#allocation2 + $0x1d8] sm:$0xff] %v816
    %881 = vst [vmem:[#allocation2 + $0x1e0] sm:$0xff] %v817
    %882 = vst [vmem:[#allocation2 + $0x1e8] sm:$0xff] %v818
    %883 = vst [vmem:[#allocation2 + $0x1f0] sm:$0xff] %v819
    %884 = vst [vmem:[#allocation2 + $0x1f8] sm:$0xff] %v820
    // Predicated region
    $region18: #{tpu_custom_call.1} parent=1 // pred_check
      _
    $region19: #{tpu_custom_call.1} parent=1 // pred_check_branch
      %886 = sbr.rel (0) target = $region21
    $region20: #{tpu_custom_call.1} parent=1 // pred_region
      %s888 = ssub.s32 8192, 8192
      %889 = vsyncadd [#allocation3], %s888
      %s890 = sshll.u32 [#allocation2], 4
      %s891 = int_to_ptr.vmem [resolvable:$true] %s890
      %896 = dma.vmem_to_hbm [thread:$0]  %s891, 8192, %s4, [#allocation3], 128, 128, 8
    $region21: #{tpu_custom_call.1} parent=1 // pred_fallthru
      _
    // Predicated region
    $region22: #{tpu_custom_call.1} parent=1 // pred_check
      _
    $region23: #{tpu_custom_call.1} parent=1 // pred_check_branch
      %898 = sbr.rel (0) target = $region25
    $region24: #{tpu_custom_call.1} parent=1 // pred_region
      %899 = dma.done [#allocation3], 8192
    $region25: #{tpu_custom_call.1} parent=1 // pred_fallthru
      _
    %900 = vsyncpa [#allocation3], 1

</llo_original>
